<compile_context>
chip_gen: v6e
topology: v6e:2x2x1
jax: 0.10.0
libtpu: 0.0.40
codegen_flags: <defaults>
</compile_context>

<pallas_src>
import jax
import jax.numpy as jnp
from jax import lax
from jax.experimental import pallas as pl
from jax.experimental.pallas import tpu as pltpu


def mlp_embed_kernel(x_ref, w1q_ref, s1_ref, b1_ref, w2_ref, b2_ref, o_ref):
    # x:   (TB, dim_in)        f32  (cast to bf16 here; no wrapper pre-pass)
    # w1q: (dim_in, hidden)    int8 (per-output-column quantized)
    # s1:  (1, hidden)         f32  dequant scales
    # b1:  (1, hidden)         f32
    # w2:  (hidden, dim_out)   bf16
    # b2:  (1, dim_out)        f32
    # o:   (TB, dim_out)       f32
    x = x_ref[...].astype(jnp.bfloat16)

    # linear1: bf16 MXU matmul on the int8-valued weights (integer values up
    # to 127 are exact in bf16), f32 accumulation; per-column dequant scale
    # is folded into the f32 epilogue together with the bias.
    w1 = w1q_ref[...].astype(jnp.bfloat16)
    h = jnp.dot(x, w1, preferred_element_type=jnp.float32)
    h = h * s1_ref[...] + b1_ref[...]
    h = jnp.maximum(h, 0.0)

    # linear2: bf16 MXU matmul, f32 accumulation, bias in f32.
    y = jnp.dot(h.astype(jnp.bfloat16), w2_ref[...],
                preferred_element_type=jnp.float32) + b2_ref[...]

    # L2 normalize along features: y * rsqrt(sum(y^2) + eps).
    # rsqrt goes to the EUP slot; eps avoids NaN on an all-zero row.
    sumsq = jnp.sum(y * y, axis=1, keepdims=True)
    o_ref[...] = (y * lax.rsqrt(sumsq + 1e-12)).astype(o_ref.dtype)


def _default_batch_tile():
    # v7x: 2 TensorCores/chip -> smaller tile so the "parallel" batch axis
    # has >= 2 grid points once B grows.  v5e/v6e: single TC -> bigger tile
    # amortizes the ~0.35us per-grid-step overhead.  Irrelevant at B=2.
    try:
        kind = jax.devices()[0].device_kind.lower()
    except Exception:
        return 256
    return 128 if ("v7" in kind or "tpu7" in kind) else 512


def prepare_mlp_embed_params(w1, b1, w2, b2):
    """One-time weight preparation -- do NOT call this per step.

    w1: (dim_in, 2*dim_out), w2: (2*dim_out, dim_out)  (PyTorch weights transposed).
    w1 (the dominant weight-DMA term) is stored int8 + per-output-column f32
    scale; w2 (small) stays bf16; biases stay f32.
    """
    dim_in, dim_hidden = w1.shape
    dim_out = w2.shape[1]
    assert w2.shape[0] == dim_hidden
    s1 = jnp.max(jnp.abs(w1), axis=0, keepdims=True) / 127.0     # (1, hidden)
    s1 = jnp.maximum(s1, 1e-30)
    w1_q = jnp.clip(jnp.round(w1 / s1), -127.0, 127.0).astype(jnp.int8)
    return dict(
        w1_q=w1_q,
        s1=s1.astype(jnp.float32),
        b1=jnp.asarray(b1, jnp.float32).reshape(1, dim_hidden),
        w2=jnp.asarray(w2, jnp.bfloat16),
        b2=jnp.asarray(b2, jnp.float32).reshape(1, dim_out),
    )


def mlp_embed(x_nchw, params, *, tb=None):
    """x_nchw: (B, ...) float32, flattened to (B, dim_in) like torch .view(B, -1).

    Returns (B, dim_out) float32 L2-normalized embeddings.
    """
    w1_q, s1, b1 = params["w1_q"], params["s1"], params["b1"]
    w2, b2 = params["w2"], params["b2"]
    dim_in, dim_hidden = w1_q.shape
    dim_out = w2.shape[1]

    B = x_nchw.shape[0]
    x2d = x_nchw.reshape(B, -1).astype(jnp.float32)
    assert x2d.shape[1] == dim_in

    if tb is None:
        tb = _default_batch_tile()

    if B <= tb:
        # Single grid point: block shape == full array shape, so no (8,128)
        # padding is needed, no wrapper pad pre-pass, no trailing slice.
        tb, pb, x_in = B, B, x2d
    else:
        pb = pl.cdiv(B, tb) * tb
        x_in = x2d if pb == B else jnp.pad(x2d, ((0, pb - B), (0, 0)))
    grid = (pb // tb,)

    # TODO(synk): if this embed runs every step, keep w1_q/w2 VMEM-resident
    # across calls (cross-call prefetch returning a SEMAPHORE/VMEM future) or
    # fuse this MLP into the caller's kernel -- per-call weight DMA plus launch
    # overhead dominates at small B, especially on v7x.
    out = pl.pallas_call(
        mlp_embed_kernel,
        out_shape=jax.ShapeDtypeStruct((pb, dim_out), jnp.float32),
        grid=grid,
        in_specs=[
            pl.BlockSpec((tb, dim_in), lambda i: (i, 0)),           # activations stream (f32)
            pl.BlockSpec((dim_in, dim_hidden), lambda i: (0, 0)),   # int8 weights, pinned
            pl.BlockSpec((1, dim_hidden), lambda i: (0, 0)),        # dequant scales
            pl.BlockSpec((1, dim_hidden), lambda i: (0, 0)),        # bias1
            pl.BlockSpec((dim_hidden, dim_out), lambda i: (0, 0)),  # bf16 weights, pinned
            pl.BlockSpec((1, dim_out), lambda i: (0, 0)),           # bias2
        ],
        out_specs=pl.BlockSpec((tb, dim_out), lambda i: (i, 0)),
        compiler_params=pltpu.CompilerParams(dimension_semantics=("parallel",)),
    )(x_in, w1_q, s1, b1, w2, b2)

    return out if pb == B else out[:B]


if __name__ == "__main__":
    # Module defaults: dim_in=1024, dim_out=128.
    # Input (2, 4, 16, 16) flattens to (2, 1024) which matches dim_in.
    B, C, H, W = 2, 4, 16, 16
    dim_in = C * H * W          # 1024
    dim_out = 128
    dim_hidden = 2 * dim_out    # 256

    key = jax.random.PRNGKey(0)
    kx, k1, kb1, k2, kb2 = jax.random.split(key, 5)

    x = jax.random.normal(kx, (B, C, H, W), dtype=jnp.float32)

    # Deterministic parameter init (PyTorch Linear stores weight as (out, in);
    # we keep the transposed (in, out) layout for the kernel).
    bound1 = 1.0 / (dim_in ** 0.5)
    w1 = jax.random.uniform(k1, (dim_in, dim_hidden), jnp.float32, -bound1, bound1)
    b1 = jax.random.uniform(kb1, (dim_hidden,), jnp.float32, -bound1, bound1)
    bound2 = 1.0 / (dim_hidden ** 0.5)
    w2 = jax.random.uniform(k2, (dim_hidden, dim_out), jnp.float32, -bound2, bound2)
    b2 = jax.random.uniform(kb2, (dim_out,), jnp.float32, -bound2, bound2)

    params = prepare_mlp_embed_params(w1, b1, w2, b2)   # one-time weight prep
    out = jax.block_until_ready(mlp_embed(x, params))

    # Pure-JAX f32 reference (loose tolerance: kernel matmuls run bf16
    # activations x int8/bf16 weights with f32 accumulation).
    x2d = x.reshape(B, -1)
    h = jnp.maximum(x2d @ w1 + b1, 0.0)
    y = h @ w2 + b2
    ref = y / jnp.sqrt(jnp.sum(y * y, axis=1, keepdims=True))

    assert out.shape == (B, dim_out)
    assert bool(jnp.all(jnp.isfinite(out)))
    assert jnp.allclose(out, ref, atol=2e-2, rtol=2e-2), float(
        jnp.max(jnp.abs(out - ref)))

    print("KERNEL_OK")
</pallas_src>

<mosaic_0001>
module attributes {stable_mosaic.version = 11 : i64} {
  func.func @mlp_embed_kernel(%arg0: i32, %arg1: memref<2x1024xf32, #tpu.memory_space<vmem>>, %arg2: memref<1024x256xi8, #tpu.memory_space<vmem>>, %arg3: memref<1x256xf32, #tpu.memory_space<vmem>>, %arg4: memref<1x256xf32, #tpu.memory_space<vmem>>, %arg5: memref<256x128xbf16, #tpu.memory_space<vmem>>, %arg6: memref<1x128xf32, #tpu.memory_space<vmem>>, %arg7: memref<2x128xf32, #tpu.memory_space<vmem>>) attributes {dimension_semantics = [#tpu.dimension_semantics<parallel>], iteration_bounds = array<i64: 1>, scalar_prefetch = 0 : i64, scratch_operands = 0 : i64, tpu.core_type = #tpu.core_type<tc>, window_params = [{transform_indices = @transform_0, window_bounds = array<i64: 2, 1024>}, {pipeline_mode = #tpu.pipeline_mode<synchronous>, transform_indices = @transform_1, window_bounds = array<i64: 1024, 256>}, {pipeline_mode = #tpu.pipeline_mode<synchronous>, transform_indices = @transform_2, window_bounds = array<i64: 1, 256>}, {pipeline_mode = #tpu.pipeline_mode<synchronous>, transform_indices = @transform_3, window_bounds = array<i64: 1, 256>}, {pipeline_mode = #tpu.pipeline_mode<synchronous>, transform_indices = @transform_4, window_bounds = array<i64: 256, 128>}, {pipeline_mode = #tpu.pipeline_mode<synchronous>, transform_indices = @transform_5, window_bounds = array<i64: 1, 128>}, {transform_indices = @transform_6, window_bounds = array<i64: 2, 128>}]} {
    %c0 = arith.constant 0 : index
    %c0_0 = arith.constant 0 : index
    %0 = vector.load %arg1[%c0, %c0_0] : memref<2x1024xf32, #tpu.memory_space<vmem>>, vector<2x1024xf32>
    %1 = arith.truncf %0 : vector<2x1024xf32> to vector<2x1024xbf16>
    %c0_1 = arith.constant 0 : index
    %c0_2 = arith.constant 0 : index
    %2 = vector.load %arg2[%c0_1, %c0_2] : memref<1024x256xi8, #tpu.memory_space<vmem>>, vector<1024x256xi8>
    %3 = arith.sitofp %2 : vector<1024x256xi8> to vector<1024x256xbf16>
    %cst = arith.constant dense<0.000000e+00> : vector<2x256xf32>
    %4 = tpu.matmul %1, %3, %cst {dimension_numbers = #tpu.dot_dimension_numbers<[1], [0], [0], [1], [0, 0, 1, 1], [], []>} : vector<2x1024xbf16>, vector<1024x256xbf16>, vector<2x256xf32> -> vector<2x256xf32>
    %c0_3 = arith.constant 0 : index
    %c0_4 = arith.constant 0 : index
    %5 = vector.load %arg3[%c0_3, %c0_4] : memref<1x256xf32, #tpu.memory_space<vmem>>, vector<1x256xf32>
    %6 = vector.broadcast %5 : vector<1x256xf32> to vector<2x256xf32>
    %7 = arith.mulf %4, %6 : vector<2x256xf32>
    %c0_5 = arith.constant 0 : index
    %c0_6 = arith.constant 0 : index
    %8 = vector.load %arg4[%c0_5, %c0_6] : memref<1x256xf32, #tpu.memory_space<vmem>>, vector<1x256xf32>
    %9 = vector.broadcast %8 : vector<1x256xf32> to vector<2x256xf32>
    %10 = arith.addf %7, %9 : vector<2x256xf32>
    %cst_7 = arith.constant 0.000000e+00 : f32
    %11 = vector.broadcast %cst_7 : f32 to vector<2x256xf32>
    %12 = arith.maximumf %10, %11 : vector<2x256xf32>
    %13 = arith.truncf %12 : vector<2x256xf32> to vector<2x256xbf16>
    %c0_8 = arith.constant 0 : index
    %c0_9 = arith.constant 0 : index
    %14 = vector.load %arg5[%c0_8, %c0_9] : memref<256x128xbf16, #tpu.memory_space<vmem>>, vector<256x128xbf16>
    %cst_10 = arith.constant dense<0.000000e+00> : vector<2x128xf32>
    %15 = tpu.matmul %13, %14, %cst_10 {dimension_numbers = #tpu.dot_dimension_numbers<[1], [0], [0], [1], [0, 0, 1, 1], [], []>} : vector<2x256xbf16>, vector<256x128xbf16>, vector<2x128xf32> -> vector<2x128xf32>
    %c0_11 = arith.constant 0 : index
    %c0_12 = arith.constant 0 : index
    %16 = vector.load %arg6[%c0_11, %c0_12] : memref<1x128xf32, #tpu.memory_space<vmem>>, vector<1x128xf32>
    %17 = vector.broadcast %16 : vector<1x128xf32> to vector<2x128xf32>
    %18 = arith.addf %15, %17 : vector<2x128xf32>
    %19 = arith.mulf %18, %18 : vector<2x128xf32>
    %cst_13 = arith.constant dense<0.000000e+00> : vector<2xf32>
    %20 = vector.multi_reduction <add>, %19, %cst_13 [1] : vector<2x128xf32> to vector<2xf32>
    %21 = vector.shape_cast %20 : vector<2xf32> to vector<2x1xf32>
    %cst_14 = arith.constant 9.99999996E-13 : f32
    %22 = vector.broadcast %cst_14 : f32 to vector<2x1xf32>
    %23 = arith.addf %21, %22 : vector<2x1xf32>
    %24 = math.rsqrt %23 : vector<2x1xf32>
    %25 = vector.broadcast %24 : vector<2x1xf32> to vector<2x128xf32>
    %26 = arith.mulf %18, %25 : vector<2x128xf32>
    %c0_15 = arith.constant 0 : index
    %c0_16 = arith.constant 0 : index
    %27 = vector.load %arg7[%c0_15, %c0_16] : memref<2x128xf32, #tpu.memory_space<vmem>>, vector<2x128xf32>
    tpu.vector_store %arg7[%c0_15, %c0_16], %26 {strides = array<i32>} : memref<2x128xf32, #tpu.memory_space<vmem>>, vector<2x128xf32>,
    return
  }
  func.func @transform_0(%arg0: i32) -> (i32, i32) {
    %c0_i32 = arith.constant 0 : i32
    %c0_i32_0 = arith.constant 0 : i32
    return %arg0, %c0_i32 : i32, i32
  }
  func.func @transform_1(%arg0: i32) -> (i32, i32) {
    %c0_i32 = arith.constant 0 : i32
    %c0_i32_0 = arith.constant 0 : i32
    %c0_i32_1 = arith.constant 0 : i32
    return %c0_i32, %c0_i32_0 : i32, i32
  }
  func.func @transform_2(%arg0: i32) -> (i32, i32) {
    %c0_i32 = arith.constant 0 : i32
    %c0_i32_0 = arith.constant 0 : i32
    %c0_i32_1 = arith.constant 0 : i32
    return %c0_i32, %c0_i32_0 : i32, i32
  }
  func.func @transform_3(%arg0: i32) -> (i32, i32) {
    %c0_i32 = arith.constant 0 : i32
    %c0_i32_0 = arith.constant 0 : i32
    %c0_i32_1 = arith.constant 0 : i32
    return %c0_i32, %c0_i32_0 : i32, i32
  }
  func.func @transform_4(%arg0: i32) -> (i32, i32) {
    %c0_i32 = arith.constant 0 : i32
    %c0_i32_0 = arith.constant 0 : i32
    %c0_i32_1 = arith.constant 0 : i32
    return %c0_i32, %c0_i32_0 : i32, i32
  }
  func.func @transform_5(%arg0: i32) -> (i32, i32) {
    %c0_i32 = arith.constant 0 : i32
    %c0_i32_0 = arith.constant 0 : i32
    %c0_i32_1 = arith.constant 0 : i32
    return %c0_i32, %c0_i32_0 : i32, i32
  }
  func.func @transform_6(%arg0: i32) -> (i32, i32) {
    %c0_i32 = arith.constant 0 : i32
    %c0_i32_0 = arith.constant 0 : i32
    return %arg0, %c0_i32 : i32, i32
  }
}

</mosaic_0001>

<llo_original>
// kernel: tpu_custom_call.1
$region0: #{tpu_custom_call.1}
  #allocation0 [shape = 'u32[]', space=smem, size = 0x4, offset = 0x4, fixed_abs, tag = 'smem constant byte address 0x4 - core index']
  #allocation1 [shape = 'u32[144,128]{1,0:T(1,128)}', space=vmem, size = 0x12000, scoped, tag = 'internal scratch']
  %s0 = inlined_call_operand.hbm [shape: f32[2,1024], index: 0, kind: input, shape index: {}]
  %s1 = inlined_call_operand.hbm [shape: s8[1024,256], index: 1, kind: input, shape index: {}]
  %s2 = inlined_call_operand.vmem [shape: f32[1,256], index: 2, kind: input, shape index: {}]
  %s3 = inlined_call_operand.vmem [shape: f32[1,256], index: 3, kind: input, shape index: {}]
  %s4 = inlined_call_operand.hbm [shape: bf16[256,128], index: 4, kind: input, shape index: {}]
  %s5 = inlined_call_operand.vmem [shape: f32[1,128], index: 5, kind: input, shape index: {}]
  %s6 = inlined_call_operand.hbm [shape: f32[2,128], index: 6, kind: output, shape index: {}]
  %s7 = sld [smem:[#allocation0]]
  $region46: #{tpu_custom_call.1} parent=0
    _
  %s9 = ssub.s32 1, %s7
  %s10 = scalar_select 0, %s9, %s7
  $region1: #{tpu_custom_call.1} parent=0
    #allocation2 [shape = 'u8[8192]{0}', space=vmem, size = 0x2000, scoped, tag = 'input window, operand 0, single buffered']
    #allocation3 [shape = 's32[1]{0}', space=sflag, size = 0x4, scoped, tag = 'scoped memory for tpu_custom_call.1']
    #allocation4 [shape = 's32[1]{0}', space=sflag, size = 0x4, scoped, tag = 'scoped memory for tpu_custom_call.1']
    #allocation5 [shape = 'u8[262144]{0}', space=vmem, size = 0x40000, scoped, tag = 'input window, operand 1, single buffered']
    #allocation6 [shape = 's32[1]{0}', space=sflag, size = 0x4, scoped, tag = 'scoped memory for tpu_custom_call.1']
    #allocation7 [shape = 'u8[65536]{0}', space=vmem, size = 0x10000, scoped, tag = 'input window, operand 4, single buffered']
    #allocation8 [shape = 'u8[1024]{0}', space=vmem, size = 0x400, scoped, tag = 'output window, operand 0, single buffered']
    %11 = vsyncpa [#allocation3], 0
    %12 = vsyncpa [#allocation6], 0
    %13 = vsyncpa [#allocation4], 0
    // Predicated region
    $region2: #{tpu_custom_call.1} parent=1 // pred_check
      _
    $region3: #{tpu_custom_call.1} parent=1 // pred_check_branch
      %15 = sbr.rel (0) target = $region5
    $region4: #{tpu_custom_call.1} parent=1 // pred_region
      %s17 = ssub.s32 256, 256
      %18 = vsyncadd [#allocation3], %s17
      %s20 = sshll.u32 [#allocation2], 4
      %s21 = int_to_ptr.vmem [resolvable:$true] %s20
      %23 = dma.hbm_to_vmem [thread:$0]  %s0, 256, %s21, [#allocation3]
    $region5: #{tpu_custom_call.1} parent=1 // pred_fallthru
      _
    // Predicated region
    $region6: #{tpu_custom_call.1} parent=1 // pred_check
      _
    $region7: #{tpu_custom_call.1} parent=1 // pred_check_branch
      %25 = sbr.rel (0) target = $region9
    $region8: #{tpu_custom_call.1} parent=1 // pred_region
      %s27 = ssub.s32 8192, 8192
      %28 = vsyncadd [#allocation6], %s27
      %s29 = sshll.u32 [#allocation5], 4
      %s30 = int_to_ptr.vmem [resolvable:$true] %s29
      %35 = dma.hbm_to_vmem [thread:$0]  %s1, 8192, %s30, [#allocation6], 256, 256, 16
    $region9: #{tpu_custom_call.1} parent=1 // pred_fallthru
      _
    // Predicated region
    $region10: #{tpu_custom_call.1} parent=1 // pred_check
      _
    $region11: #{tpu_custom_call.1} parent=1 // pred_check_branch
      %37 = sbr.rel (0) target = $region13
    $region12: #{tpu_custom_call.1} parent=1 // pred_region
      _
    $region13: #{tpu_custom_call.1} parent=1 // pred_fallthru
      _
    // Predicated region
    $region14: #{tpu_custom_call.1} parent=1 // pred_check
      _
    $region15: #{tpu_custom_call.1} parent=1 // pred_check_branch
      %39 = sbr.rel (0) target = $region17
    $region16: #{tpu_custom_call.1} parent=1 // pred_region
      _
    $region17: #{tpu_custom_call.1} parent=1 // pred_fallthru
      _
    // Predicated region
    $region18: #{tpu_custom_call.1} parent=1 // pred_check
      _
    $region19: #{tpu_custom_call.1} parent=1 // pred_check_branch
      %41 = sbr.rel (0) target = $region21
    $region20: #{tpu_custom_call.1} parent=1 // pred_region
      %s43 = ssub.s32 2048, 2048
      %44 = vsyncadd [#allocation6], %s43
      %s45 = sshll.u32 [#allocation7], 4
      %s46 = int_to_ptr.vmem [resolvable:$true] %s45
      %51 = dma.hbm_to_vmem [thread:$0]  %s4, 2048, %s46, [#allocation6], 64, 64, 4
    $region21: #{tpu_custom_call.1} parent=1 // pred_fallthru
      _
    // Predicated region
    $region22: #{tpu_custom_call.1} parent=1 // pred_check
      _
    $region23: #{tpu_custom_call.1} parent=1 // pred_check_branch
      %53 = sbr.rel (0) target = $region25
    $region24: #{tpu_custom_call.1} parent=1 // pred_region
      _
    $region25: #{tpu_custom_call.1} parent=1 // pred_fallthru
      _
    // Predicated region
    $region26: #{tpu_custom_call.1} parent=1 // pred_check
      _
    $region27: #{tpu_custom_call.1} parent=1 // pred_check_branch
      %55 = sbr.rel (0) target = $region29
    $region28: #{tpu_custom_call.1} parent=1 // pred_region
      %56 = dma.done [#allocation3], 256
    $region29: #{tpu_custom_call.1} parent=1 // pred_fallthru
      _
    // Predicated region
    $region30: #{tpu_custom_call.1} parent=1 // pred_check
      _
    $region31: #{tpu_custom_call.1} parent=1 // pred_check_branch
      %58 = sbr.rel (0) target = $region33
    $region32: #{tpu_custom_call.1} parent=1 // pred_region
      %59 = dma.done [#allocation6], 8192
    $region33: #{tpu_custom_call.1} parent=1 // pred_fallthru
      _
    // Predicated region
    $region34: #{tpu_custom_call.1} parent=1 // pred_check
      _
    $region35: #{tpu_custom_call.1} parent=1 // pred_check_branch
      %61 = sbr.rel (0) target = $region37
    $region36: #{tpu_custom_call.1} parent=1 // pred_region
      %62 = dma.done [#allocation6], 2048
    $region37: #{tpu_custom_call.1} parent=1 // pred_fallthru
      _
    %v64 = vld [vmem:[#allocation2] sm:$0xff]
    %v65 = vld [vmem:[#allocation2 + $0x8] sm:$0xff]
    %v68 = vcombine.high %v64, %v64
    %v70 = vunpack.c.l.s4 1983009808
    %v71 = vunpack.c.0.s8 %v70
    %v72 = vlaneseq
    %v73 = vshrl.u32 %v72, 7
    %v74 = vsub.s32 %v71, %v73
    %v75 = vrot.slane %v64, %v74
    %v77 = vunpack.c.l.s4 1983009808
    %v78 = vunpack.c.0.s8 %v77
    %v79 = vlaneseq
    %v80 = vshrl.u32 %v79, 7
    %v81 = vsub.s32 %v78, %v80
    %v82 = vrot.slane %v68, %v81
    %v83 = vcombine.high %v75, %v75
    %v84 = vcombine.high %v82, %v82
    %v85 = vcombine.high %v65, %v65
    %v87 = vunpack.c.l.s4 1983009808
    %v88 = vunpack.c.0.s8 %v87
    %v89 = vlaneseq
    %v90 = vshrl.u32 %v89, 7
    %v91 = vsub.s32 %v88, %v90
    %v92 = vrot.slane %v65, %v91
    %v94 = vunpack.c.l.s4 1983009808
    %v95 = vunpack.c.0.s8 %v94
    %v96 = vlaneseq
    %v97 = vshrl.u32 %v96, 7
    %v98 = vsub.s32 %v95, %v97
    %v99 = vrot.slane %v85, %v98
    %v100 = vcombine.high %v92, %v92
    %v101 = vcombine.high %v99, %v99
    %v110 = vpack.c.bf16 %v75, %v75
    %v111 = vpack.c.bf16 %v83, %v83
    %v112 = vpack.c.bf16 %v82, %v82
    %v113 = vpack.c.bf16 %v84, %v84
    %v114 = vpack.c.bf16 %v92, %v92
    %v115 = vpack.c.bf16 %v100, %v100
    %v116 = vpack.c.bf16 %v99, %v99
    %v117 = vpack.c.bf16 %v101, %v101
    %v118 = vld [vmem:[#allocation5] sm:$0xff]
    %v119 = vld [vmem:[#allocation5 + $0x8] sm:$0xff]
    %v120 = vld [vmem:[#allocation5 + $0x10] sm:$0xff]
    %v121 = vld [vmem:[#allocation5 + $0x18] sm:$0xff]
    %v122 = vld [vmem:[#allocation5 + $0x20] sm:$0xff]
    %v123 = vld [vmem:[#allocation5 + $0x28] sm:$0xff]
    %v124 = vld [vmem:[#allocation5 + $0x30] sm:$0xff]
    %v125 = vld [vmem:[#allocation5 + $0x38] sm:$0xff]
    %v126 = vld [vmem:[#allocation5 + $0x40] sm:$0xff]
    %v127 = vld [vmem:[#allocation5 + $0x48] sm:$0xff]
    %v128 = vld [vmem:[#allocation5 + $0x50] sm:$0xff]
    %v129 = vld [vmem:[#allocation5 + $0x58] sm:$0xff]
    %v130 = vld [vmem:[#allocation5 + $0x60] sm:$0xff]
    %v131 = vld [vmem:[#allocation5 + $0x68] sm:$0xff]
    %v132 = vld [vmem:[#allocation5 + $0x70] sm:$0xff]
    %v133 = vld [vmem:[#allocation5 + $0x78] sm:$0xff]
    %v134 = vld [vmem:[#allocation5 + $0x80] sm:$0xff]
    %v135 = vld [vmem:[#allocation5 + $0x88] sm:$0xff]
    %v136 = vld [vmem:[#allocation5 + $0x90] sm:$0xff]
    %v137 = vld [vmem:[#allocation5 + $0x98] sm:$0xff]
    %v138 = vld [vmem:[#allocation5 + $0xa0] sm:$0xff]
    %v139 = vld [vmem:[#allocation5 + $0xa8] sm:$0xff]
    %v140 = vld [vmem:[#allocation5 + $0xb0] sm:$0xff]
    %v141 = vld [vmem:[#allocation5 + $0xb8] sm:$0xff]
    %v142 = vld [vmem:[#allocation5 + $0xc0] sm:$0xff]
    %v143 = vld [vmem:[#allocation5 + $0xc8] sm:$0xff]
    %v144 = vld [vmem:[#allocation5 + $0xd0] sm:$0xff]
    %v145 = vld [vmem:[#allocation5 + $0xd8] sm:$0xff]
    %v146 = vld [vmem:[#allocation5 + $0xe0] sm:$0xff]
    %v147 = vld [vmem:[#allocation5 + $0xe8] sm:$0xff]
    %v148 = vld [vmem:[#allocation5 + $0xf0] sm:$0xff]
    %v149 = vld [vmem:[#allocation5 + $0xf8] sm:$0xff]
    %v150 = vld [vmem:[#allocation5 + $0x100] sm:$0xff]
    %v151 = vld [vmem:[#allocation5 + $0x108] sm:$0xff]
    %v152 = vld [vmem:[#allocation5 + $0x110] sm:$0xff]
    %v153 = vld [vmem:[#allocation5 + $0x118] sm:$0xff]
    %v154 = vld [vmem:[#allocation5 + $0x120] sm:$0xff]
    %v155 = vld [vmem:[#allocation5 + $0x128] sm:$0xff]
    %v156 = vld [vmem:[#allocation5 + $0x130] sm:$0xff]
    %v157 = vld [vmem:[#allocation5 + $0x138] sm:$0xff]
    %v158 = vld [vmem:[#allocation5 + $0x140] sm:$0xff]
    %v159 = vld [vmem:[#allocation5 + $0x148] sm:$0xff]
    %v160 = vld [vmem:[#allocation5 + $0x150] sm:$0xff]
    %v161 = vld [vmem:[#allocation5 + $0x158] sm:$0xff]
    %v162 = vld [vmem:[#allocation5 + $0x160] sm:$0xff]
    %v163 = vld [vmem:[#allocation5 + $0x168] sm:$0xff]
    %v164 = vld [vmem:[#allocation5 + $0x170] sm:$0xff]
    %v165 = vld [vmem:[#allocation5 + $0x178] sm:$0xff]
    %v166 = vld [vmem:[#allocation5 + $0x180] sm:$0xff]
    %v167 = vld [vmem:[#allocation5 + $0x188] sm:$0xff]
    %v168 = vld [vmem:[#allocation5 + $0x190] sm:$0xff]
    %v169 = vld [vmem:[#allocation5 + $0x198] sm:$0xff]
    %v170 = vld [vmem:[#allocation5 + $0x1a0] sm:$0xff]
    %v171 = vld [vmem:[#allocation5 + $0x1a8] sm:$0xff]
    %v172 = vld [vmem:[#allocation5 + $0x1b0] sm:$0xff]
    %v173 = vld [vmem:[#allocation5 + $0x1b8] sm:$0xff]
    %v174 = vld [vmem:[#allocation5 + $0x1c0] sm:$0xff]
    %v175 = vld [vmem:[#allocation5 + $0x1c8] sm:$0xff]
    %v176 = vld [vmem:[#allocation5 + $0x1d0] sm:$0xff]
    %v177 = vld [vmem:[#allocation5 + $0x1d8] sm:$0xff]
    %v178 = vld [vmem:[#allocation5 + $0x1e0] sm:$0xff]
    %v179 = vld [vmem:[#allocation5 + $0x1e8] sm:$0xff]
    %v180 = vld [vmem:[#allocation5 + $0x1f0] sm:$0xff]
    %v181 = vld [vmem:[#allocation5 + $0x1f8] sm:$0xff]
    %v182 = vunpack.c.l.s8.bf16 %v118
    %v183 = vunpack.c.l.s8.bf16 %v119
    %v184 = vunpack.c.h.s8.bf16 %v118
    %v185 = vunpack.c.h.s8.bf16 %v119
    %v186 = vunpack.c.l.s8.bf16 %v120
    %v187 = vunpack.c.l.s8.bf16 %v121
    %v188 = vunpack.c.h.s8.bf16 %v120
    %v189 = vunpack.c.h.s8.bf16 %v121
    %v190 = vunpack.c.l.s8.bf16 %v122
    %v191 = vunpack.c.l.s8.bf16 %v123
    %v192 = vunpack.c.h.s8.bf16 %v122
    %v193 = vunpack.c.h.s8.bf16 %v123
    %v194 = vunpack.c.l.s8.bf16 %v124
    %v195 = vunpack.c.l.s8.bf16 %v125
    %v196 = vunpack.c.h.s8.bf16 %v124
    %v197 = vunpack.c.h.s8.bf16 %v125
    %v198 = vunpack.c.l.s8.bf16 %v126
    %v199 = vunpack.c.l.s8.bf16 %v127
    %v200 = vunpack.c.h.s8.bf16 %v126
    %v201 = vunpack.c.h.s8.bf16 %v127
    %v202 = vunpack.c.l.s8.bf16 %v128
    %v203 = vunpack.c.l.s8.bf16 %v129
    %v204 = vunpack.c.h.s8.bf16 %v128
    %v205 = vunpack.c.h.s8.bf16 %v129
    %v206 = vunpack.c.l.s8.bf16 %v130
    %v207 = vunpack.c.l.s8.bf16 %v131
    %v208 = vunpack.c.h.s8.bf16 %v130
    %v209 = vunpack.c.h.s8.bf16 %v131
    %v210 = vunpack.c.l.s8.bf16 %v132
    %v211 = vunpack.c.l.s8.bf16 %v133
    %v212 = vunpack.c.h.s8.bf16 %v132
    %v213 = vunpack.c.h.s8.bf16 %v133
    %v214 = vunpack.c.l.s8.bf16 %v134
    %v215 = vunpack.c.l.s8.bf16 %v135
    %v216 = vunpack.c.h.s8.bf16 %v134
    %v217 = vunpack.c.h.s8.bf16 %v135
    %v218 = vunpack.c.l.s8.bf16 %v136
    %v219 = vunpack.c.l.s8.bf16 %v137
    %v220 = vunpack.c.h.s8.bf16 %v136
    %v221 = vunpack.c.h.s8.bf16 %v137
    %v222 = vunpack.c.l.s8.bf16 %v138
    %v223 = vunpack.c.l.s8.bf16 %v139
    %v224 = vunpack.c.h.s8.bf16 %v138
    %v225 = vunpack.c.h.s8.bf16 %v139
    %v226 = vunpack.c.l.s8.bf16 %v140
    %v227 = vunpack.c.l.s8.bf16 %v141
    %v228 = vunpack.c.h.s8.bf16 %v140
    %v229 = vunpack.c.h.s8.bf16 %v141
    %v230 = vunpack.c.l.s8.bf16 %v142
    %v231 = vunpack.c.l.s8.bf16 %v143
    %v232 = vunpack.c.h.s8.bf16 %v142
    %v233 = vunpack.c.h.s8.bf16 %v143
    %v234 = vunpack.c.l.s8.bf16 %v144
    %v235 = vunpack.c.l.s8.bf16 %v145
    %v236 = vunpack.c.h.s8.bf16 %v144
    %v237 = vunpack.c.h.s8.bf16 %v145
    %v238 = vunpack.c.l.s8.bf16 %v146
    %v239 = vunpack.c.l.s8.bf16 %v147
    %v240 = vunpack.c.h.s8.bf16 %v146
    %v241 = vunpack.c.h.s8.bf16 %v147
    %v242 = vunpack.c.l.s8.bf16 %v148
    %v243 = vunpack.c.l.s8.bf16 %v149
    %v244 = vunpack.c.h.s8.bf16 %v148
    %v245 = vunpack.c.h.s8.bf16 %v149
    %v246 = vunpack.c.l.s8.bf16 %v150
    %v247 = vunpack.c.l.s8.bf16 %v151
    %v248 = vunpack.c.h.s8.bf16 %v150
    %v249 = vunpack.c.h.s8.bf16 %v151
    %v250 = vunpack.c.l.s8.bf16 %v152
    %v251 = vunpack.c.l.s8.bf16 %v153
    %v252 = vunpack.c.h.s8.bf16 %v152
    %v253 = vunpack.c.h.s8.bf16 %v153
    %v254 = vunpack.c.l.s8.bf16 %v154
    %v255 = vunpack.c.l.s8.bf16 %v155
    %v256 = vunpack.c.h.s8.bf16 %v154
    %v257 = vunpack.c.h.s8.bf16 %v155
    %v258 = vunpack.c.l.s8.bf16 %v156
    %v259 = vunpack.c.l.s8.bf16 %v157
    %v260 = vunpack.c.h.s8.bf16 %v156
    %v261 = vunpack.c.h.s8.bf16 %v157
    %v262 = vunpack.c.l.s8.bf16 %v158
    %v263 = vunpack.c.l.s8.bf16 %v159
    %v264 = vunpack.c.h.s8.bf16 %v158
    %v265 = vunpack.c.h.s8.bf16 %v159
    %v266 = vunpack.c.l.s8.bf16 %v160
    %v267 = vunpack.c.l.s8.bf16 %v161
    %v268 = vunpack.c.h.s8.bf16 %v160
    %v269 = vunpack.c.h.s8.bf16 %v161
    %v270 = vunpack.c.l.s8.bf16 %v162
    %v271 = vunpack.c.l.s8.bf16 %v163
    %v272 = vunpack.c.h.s8.bf16 %v162
    %v273 = vunpack.c.h.s8.bf16 %v163
    %v274 = vunpack.c.l.s8.bf16 %v164
    %v275 = vunpack.c.l.s8.bf16 %v165
    %v276 = vunpack.c.h.s8.bf16 %v164
    %v277 = vunpack.c.h.s8.bf16 %v165
    %v278 = vunpack.c.l.s8.bf16 %v166
    %v279 = vunpack.c.l.s8.bf16 %v167
    %v280 = vunpack.c.h.s8.bf16 %v166
    %v281 = vunpack.c.h.s8.bf16 %v167
    %v282 = vunpack.c.l.s8.bf16 %v168
    %v283 = vunpack.c.l.s8.bf16 %v169
    %v284 = vunpack.c.h.s8.bf16 %v168
    %v285 = vunpack.c.h.s8.bf16 %v169
    %v286 = vunpack.c.l.s8.bf16 %v170
    %v287 = vunpack.c.l.s8.bf16 %v171
    %v288 = vunpack.c.h.s8.bf16 %v170
    %v289 = vunpack.c.h.s8.bf16 %v171
    %v290 = vunpack.c.l.s8.bf16 %v172
    %v291 = vunpack.c.l.s8.bf16 %v173
    %v292 = vunpack.c.h.s8.bf16 %v172
    %v293 = vunpack.c.h.s8.bf16 %v173
    %v294 = vunpack.c.l.s8.bf16 %v174
    %v295 = vunpack.c.l.s8.bf16 %v175
    %v296 = vunpack.c.h.s8.bf16 %v174
    %v297 = vunpack.c.h.s8.bf16 %v175
    %v298 = vunpack.c.l.s8.bf16 %v176
    %v299 = vunpack.c.l.s8.bf16 %v177
    %v300 = vunpack.c.h.s8.bf16 %v176
    %v301 = vunpack.c.h.s8.bf16 %v177
    %v302 = vunpack.c.l.s8.bf16 %v178
    %v303 = vunpack.c.l.s8.bf16 %v179
    %v304 = vunpack.c.h.s8.bf16 %v178
    %v305 = vunpack.c.h.s8.bf16 %v179
    %v306 = vunpack.c.l.s8.bf16 %v180
    %v307 = vunpack.c.l.s8.bf16 %v181
    %v308 = vunpack.c.h.s8.bf16 %v180
    %v309 = vunpack.c.h.s8.bf16 %v181
    %310 = vmatprep.subr.bf16.mxu0 %v197
    %311 = vmatpush1.bf16.msra.mxu0 %v196
    %312 = vmatprep.subr.bf16.mxu0 %v195
    %313 = vmatpush1.bf16.msra.mxu0 %v194
    %314 = vmatprep.subr.bf16.mxu0 %v193
    %315 = vmatpush1.bf16.msra.mxu0 %v192
    %316 = vmatprep.subr.bf16.mxu0 %v191
    %317 = vmatpush1.bf16.msra.mxu0 %v190
    %318 = vmatprep.subr.bf16.mxu0 %v189
    %319 = vmatpush1.bf16.msra.mxu0 %v188
    %320 = vmatprep.subr.bf16.mxu0 %v187
    %321 = vmatpush1.bf16.msra.mxu0 %v186
    %322 = vmatprep.subr.bf16.mxu0 %v185
    %323 = vmatpush1.bf16.msra.mxu0 %v184
    %324 = vmatprep.subr.bf16.mxu0 %v183
    %325 = vmatpush1.bf16.msra.mxu0 %v182
    %326 = vmatprep.subr.bf16.mxu0 %v213
    %327 = vmatpush2.bf16.msra.mxu0 %v212
    %328 = vmatprep.subr.bf16.mxu0 %v211
    %329 = vmatpush2.bf16.msra.mxu0 %v210
    %330 = vmatprep.subr.bf16.mxu0 %v209
    %331 = vmatpush2.bf16.msra.mxu0 %v208
    %332 = vmatprep.subr.bf16.mxu0 %v207
    %333 = vmatpush2.bf16.msra.mxu0 %v206
    %334 = vmatprep.subr.bf16.mxu0 %v205
    %335 = vmatpush2.bf16.msra.mxu0 %v204
    %336 = vmatprep.subr.bf16.mxu0 %v203
    %337 = vmatpush2.bf16.msra.mxu0 %v202
    %338 = vmatprep.subr.bf16.mxu0 %v201
    %339 = vmatpush2.bf16.msra.mxu0 %v200
    %340 = vmatprep.subr.bf16.mxu0 %v199
    %341 = vmatpush2.bf16.msra.mxu0 %v198
    %342 = vmatprep.mubr.bf16.mxu0 %v111
    %343 = vmatmul.mubr.bf16.gmra.mxu0 %v110
    %v344 = vpop.f32.mrf.mxu0
    %v345 = vadd.f32 0.0, %v344
    %v346 = vpop.f32.mrf.mxu0
    %v347 = vadd.f32 0.0, %v346
    %v348 = vpop.f32.mrf.mxu0
    %v349 = vpop.f32.mrf.mxu0
    %350 = vdwg.mxu0
    %351 = vmatprep.subr.bf16.mxu0 %v229
    %352 = vmatpush1.bf16.msra.mxu0 %v228
    %353 = vmatprep.subr.bf16.mxu0 %v227
    %354 = vmatpush1.bf16.msra.mxu0 %v226
    %355 = vmatprep.subr.bf16.mxu0 %v225
    %356 = vmatpush1.bf16.msra.mxu0 %v224
    %357 = vmatprep.subr.bf16.mxu0 %v223
    %358 = vmatpush1.bf16.msra.mxu0 %v222
    %359 = vmatprep.subr.bf16.mxu0 %v221
    %360 = vmatpush1.bf16.msra.mxu0 %v220
    %361 = vmatprep.subr.bf16.mxu0 %v219
    %362 = vmatpush1.bf16.msra.mxu0 %v218
    %363 = vmatprep.subr.bf16.mxu0 %v217
    %364 = vmatpush1.bf16.msra.mxu0 %v216
    %365 = vmatprep.subr.bf16.mxu0 %v215
    %366 = vmatpush1.bf16.msra.mxu0 %v214
    %367 = vmatprep.subr.bf16.mxu0 %v245
    %368 = vmatpush2.bf16.msra.mxu0 %v244
    %369 = vmatprep.subr.bf16.mxu0 %v243
    %370 = vmatpush2.bf16.msra.mxu0 %v242
    %371 = vmatprep.subr.bf16.mxu0 %v241
    %372 = vmatpush2.bf16.msra.mxu0 %v240
    %373 = vmatprep.subr.bf16.mxu0 %v239
    %374 = vmatpush2.bf16.msra.mxu0 %v238
    %375 = vmatprep.subr.bf16.mxu0 %v237
    %376 = vmatpush2.bf16.msra.mxu0 %v236
    %377 = vmatprep.subr.bf16.mxu0 %v235
    %378 = vmatpush2.bf16.msra.mxu0 %v234
    %379 = vmatprep.subr.bf16.mxu0 %v233
    %380 = vmatpush2.bf16.msra.mxu0 %v232
    %381 = vmatprep.subr.bf16.mxu0 %v231
    %382 = vmatpush2.bf16.msra.mxu0 %v230
    %383 = vmatprep.mubr.bf16.mxu0 %v113
    %384 = vmatmul.mubr.bf16.gmra.mxu0 %v112
    %v385 = vpop.f32.mrf.mxu0
    %v386 = vadd.f32 %v345, %v385
    %v387 = vpop.f32.mrf.mxu0
    %v388 = vadd.f32 %v347, %v387
    %v389 = vpop.f32.mrf.mxu0
    %v390 = vpop.f32.mrf.mxu0
    %391 = vdwg.mxu0
    %392 = vmatprep.subr.bf16.mxu0 %v261
    %393 = vmatpush1.bf16.msra.mxu0 %v260
    %394 = vmatprep.subr.bf16.mxu0 %v259
    %395 = vmatpush1.bf16.msra.mxu0 %v258
    %396 = vmatprep.subr.bf16.mxu0 %v257
    %397 = vmatpush1.bf16.msra.mxu0 %v256
    %398 = vmatprep.subr.bf16.mxu0 %v255
    %399 = vmatpush1.bf16.msra.mxu0 %v254
    %400 = vmatprep.subr.bf16.mxu0 %v253
    %401 = vmatpush1.bf16.msra.mxu0 %v252
    %402 = vmatprep.subr.bf16.mxu0 %v251
    %403 = vmatpush1.bf16.msra.mxu0 %v250
    %404 = vmatprep.subr.bf16.mxu0 %v249
    %405 = vmatpush1.bf16.msra.mxu0 %v248
    %406 = vmatprep.subr.bf16.mxu0 %v247
    %407 = vmatpush1.bf16.msra.mxu0 %v246
    %408 = vmatprep.subr.bf16.mxu0 %v277
    %409 = vmatpush2.bf16.msra.mxu0 %v276
    %410 = vmatprep.subr.bf16.mxu0 %v275
    %411 = vmatpush2.bf16.msra.mxu0 %v274
    %412 = vmatprep.subr.bf16.mxu0 %v273
    %413 = vmatpush2.bf16.msra.mxu0 %v272
    %414 = vmatprep.subr.bf16.mxu0 %v271
    %415 = vmatpush2.bf16.msra.mxu0 %v270
    %416 = vmatprep.subr.bf16.mxu0 %v269
    %417 = vmatpush2.bf16.msra.mxu0 %v268
    %418 = vmatprep.subr.bf16.mxu0 %v267
    %419 = vmatpush2.bf16.msra.mxu0 %v266
    %420 = vmatprep.subr.bf16.mxu0 %v265
    %421 = vmatpush2.bf16.msra.mxu0 %v264
    %422 = vmatprep.subr.bf16.mxu0 %v263
    %423 = vmatpush2.bf16.msra.mxu0 %v262
    %424 = vmatprep.mubr.bf16.mxu0 %v115
    %425 = vmatmul.mubr.bf16.gmra.mxu0 %v114
    %v426 = vpop.f32.mrf.mxu0
    %v427 = vadd.f32 %v386, %v426
    %v428 = vpop.f32.mrf.mxu0
    %v429 = vadd.f32 %v388, %v428
    %v430 = vpop.f32.mrf.mxu0
    %v431 = vpop.f32.mrf.mxu0
    %432 = vdwg.mxu0
    %433 = vmatprep.subr.bf16.mxu0 %v293
    %434 = vmatpush1.bf16.msra.mxu0 %v292
    %435 = vmatprep.subr.bf16.mxu0 %v291
    %436 = vmatpush1.bf16.msra.mxu0 %v290
    %437 = vmatprep.subr.bf16.mxu0 %v289
    %438 = vmatpush1.bf16.msra.mxu0 %v288
    %439 = vmatprep.subr.bf16.mxu0 %v287
    %440 = vmatpush1.bf16.msra.mxu0 %v286
    %441 = vmatprep.subr.bf16.mxu0 %v285
    %442 = vmatpush1.bf16.msra.mxu0 %v284
    %443 = vmatprep.subr.bf16.mxu0 %v283
    %444 = vmatpush1.bf16.msra.mxu0 %v282
    %445 = vmatprep.subr.bf16.mxu0 %v281
    %446 = vmatpush1.bf16.msra.mxu0 %v280
    %447 = vmatprep.subr.bf16.mxu0 %v279
    %448 = vmatpush1.bf16.msra.mxu0 %v278
    %449 = vmatprep.subr.bf16.mxu0 %v309
    %450 = vmatpush2.bf16.msra.mxu0 %v308
    %451 = vmatprep.subr.bf16.mxu0 %v307
    %452 = vmatpush2.bf16.msra.mxu0 %v306
    %453 = vmatprep.subr.bf16.mxu0 %v305
    %454 = vmatpush2.bf16.msra.mxu0 %v304
    %455 = vmatprep.subr.bf16.mxu0 %v303
    %456 = vmatpush2.bf16.msra.mxu0 %v302
    %457 = vmatprep.subr.bf16.mxu0 %v301
    %458 = vmatpush2.bf16.msra.mxu0 %v300
    %459 = vmatprep.subr.bf16.mxu0 %v299
    %460 = vmatpush2.bf16.msra.mxu0 %v298
    %461 = vmatprep.subr.bf16.mxu0 %v297
    %462 = vmatpush2.bf16.msra.mxu0 %v296
    %463 = vmatprep.subr.bf16.mxu0 %v295
    %464 = vmatpush2.bf16.msra.mxu0 %v294
    %465 = vmatprep.mubr.bf16.mxu0 %v117
    %466 = vmatmul.mubr.bf16.gmra.mxu0 %v116
    %v467 = vpop.f32.mrf.mxu0
    %v468 = vadd.f32 %v427, %v467
    %v469 = vpop.f32.mrf.mxu0
    %v470 = vadd.f32 %v429, %v469
    %v471 = vpop.f32.mrf.mxu0
    %v472 = vpop.f32.mrf.mxu0
    %473 = vdwg.mxu0
    %v474 = vld [vmem:[%s2] sm:$0x3]
    %v476 = vlaneseq
    %v477 = vshrl.u32 %v476, 7
    %v478 = vsub.s32 0, %v477
    %v479 = vrot.slane %v474, %v478
    %v480 = vlaneseq
    %v481 = vshrl.u32 %v480, 7
    %v482 = vsub.s32 1, %v481
    %v483 = vrot.slane %v474, %v482
    %v486 = vmul.f32 %v468, %v479
    %v487 = vmul.f32 %v470, %v483
    %v488 = vld [vmem:[%s3] sm:$0x3]
    %v490 = vlaneseq
    %v491 = vshrl.u32 %v490, 7
    %v492 = vsub.s32 0, %v491
    %v493 = vrot.slane %v488, %v492
    %v494 = vlaneseq
    %v495 = vshrl.u32 %v494, 7
    %v496 = vsub.s32 1, %v495
    %v497 = vrot.slane %v488, %v496
    %v500 = vadd.f32 %v486, %v493
    %v501 = vadd.f32 %v487, %v497
    %v502 = vmax.f32 %v500, 0.0
    %v503 = vmax.f32 %v501, 0.0
    %v504 = vpack.c.bf16 %v502, %v502
    %v505 = vpack.c.bf16 %v503, %v503
    %v506 = vld [vmem:[#allocation7] sm:$0xf]
    %v507 = vld [vmem:[#allocation7 + $0x4] sm:$0xf]
    %v508 = vld [vmem:[#allocation7 + $0x8] sm:$0xf]
    %v509 = vld [vmem:[#allocation7 + $0xc] sm:$0xf]
    %v510 = vld [vmem:[#allocation7 + $0x10] sm:$0xf]
    %v511 = vld [vmem:[#allocation7 + $0x14] sm:$0xf]
    %v512 = vld [vmem:[#allocation7 + $0x18] sm:$0xf]
    %v513 = vld [vmem:[#allocation7 + $0x1c] sm:$0xf]
    %v514 = vld [vmem:[#allocation7 + $0x20] sm:$0xf]
    %v515 = vld [vmem:[#allocation7 + $0x24] sm:$0xf]
    %v516 = vld [vmem:[#allocation7 + $0x28] sm:$0xf]
    %v517 = vld [vmem:[#allocation7 + $0x2c] sm:$0xf]
    %v518 = vld [vmem:[#allocation7 + $0x30] sm:$0xf]
    %v519 = vld [vmem:[#allocation7 + $0x34] sm:$0xf]
    %v520 = vld [vmem:[#allocation7 + $0x38] sm:$0xf]
    %v521 = vld [vmem:[#allocation7 + $0x3c] sm:$0xf]
    %v522 = vld [vmem:[#allocation7 + $0x40] sm:$0xf]
    %v523 = vld [vmem:[#allocation7 + $0x44] sm:$0xf]
    %v524 = vld [vmem:[#allocation7 + $0x48] sm:$0xf]
    %v525 = vld [vmem:[#allocation7 + $0x4c] sm:$0xf]
    %v526 = vld [vmem:[#allocation7 + $0x50] sm:$0xf]
    %v527 = vld [vmem:[#allocation7 + $0x54] sm:$0xf]
    %v528 = vld [vmem:[#allocation7 + $0x58] sm:$0xf]
    %v529 = vld [vmem:[#allocation7 + $0x5c] sm:$0xf]
    %v530 = vld [vmem:[#allocation7 + $0x60] sm:$0xf]
    %v531 = vld [vmem:[#allocation7 + $0x64] sm:$0xf]
    %v532 = vld [vmem:[#allocation7 + $0x68] sm:$0xf]
    %v533 = vld [vmem:[#allocation7 + $0x6c] sm:$0xf]
    %v534 = vld [vmem:[#allocation7 + $0x70] sm:$0xf]
    %v535 = vld [vmem:[#allocation7 + $0x74] sm:$0xf]
    %v536 = vld [vmem:[#allocation7 + $0x78] sm:$0xf]
    %v537 = vld [vmem:[#allocation7 + $0x7c] sm:$0xf]
    %v538 = vld [vmem:[%s5] sm:$0x1]
    %v540 = vlaneseq
    %v541 = vshrl.u32 %v540, 7
    %v542 = vsub.s32 0, %v541
    %v543 = vrot.slane %v538, %v542
    %v577 = vunpack.c.l.b16 %v506
    %v578 = vunpack.c.l.b16 %v507
    %v579 = vunpack.c.l.b16 %v508
    %v580 = vunpack.c.l.b16 %v509
    %v581 = vunpack.c.l.b16 %v510
    %v582 = vunpack.c.l.b16 %v511
    %v583 = vunpack.c.l.b16 %v512
    %v584 = vunpack.c.l.b16 %v513
    %v585 = vunpack.c.l.b16 %v514
    %v586 = vunpack.c.l.b16 %v515
    %v587 = vunpack.c.l.b16 %v516
    %v588 = vunpack.c.l.b16 %v517
    %v589 = vunpack.c.l.b16 %v518
    %v590 = vunpack.c.l.b16 %v519
    %v591 = vunpack.c.l.b16 %v520
    %v592 = vunpack.c.l.b16 %v521
    %v593 = vunpack.c.l.b16 %v522
    %v594 = vunpack.c.l.b16 %v523
    %v595 = vunpack.c.l.b16 %v524
    %v596 = vunpack.c.l.b16 %v525
    %v597 = vunpack.c.l.b16 %v526
    %v598 = vunpack.c.l.b16 %v527
    %v599 = vunpack.c.l.b16 %v528
    %v600 = vunpack.c.l.b16 %v529
    %v601 = vunpack.c.l.b16 %v530
    %v602 = vunpack.c.l.b16 %v531
    %v603 = vunpack.c.l.b16 %v532
    %v604 = vunpack.c.l.b16 %v533
    %v605 = vunpack.c.l.b16 %v534
    %v606 = vunpack.c.l.b16 %v535
    %v607 = vunpack.c.l.b16 %v536
    %v608 = vunpack.c.l.b16 %v537
    %v609 = vpack.c.b16 %v578, %v577
    %v610 = vpack.c.b16 %v580, %v579
    %v611 = vpack.c.b16 %v582, %v581
    %v612 = vpack.c.b16 %v584, %v583
    %v613 = vpack.c.b16 %v586, %v585
    %v614 = vpack.c.b16 %v588, %v587
    %v615 = vpack.c.b16 %v590, %v589
    %v616 = vpack.c.b16 %v592, %v591
    %v617 = vpack.c.b16 %v594, %v593
    %v618 = vpack.c.b16 %v596, %v595
    %v619 = vpack.c.b16 %v598, %v597
    %v620 = vpack.c.b16 %v600, %v599
    %v621 = vpack.c.b16 %v602, %v601
    %v622 = vpack.c.b16 %v604, %v603
    %v623 = vpack.c.b16 %v606, %v605
    %v624 = vpack.c.b16 %v608, %v607
    %641 = vmatprep.subr.bf16.mxu0 0
    %642 = vmatpush1.bf16.msra.mxu0 %v616
    %643 = vmatprep.subr.bf16.mxu0 0
    %644 = vmatpush1.bf16.msra.mxu0 %v615
    %645 = vmatprep.subr.bf16.mxu0 0
    %646 = vmatpush1.bf16.msra.mxu0 %v614
    %647 = vmatprep.subr.bf16.mxu0 0
    %648 = vmatpush1.bf16.msra.mxu0 %v613
    %649 = vmatprep.subr.bf16.mxu0 0
    %650 = vmatpush1.bf16.msra.mxu0 %v612
    %651 = vmatprep.subr.bf16.mxu0 0
    %652 = vmatpush1.bf16.msra.mxu0 %v611
    %653 = vmatprep.subr.bf16.mxu0 0
    %654 = vmatpush1.bf16.msra.mxu0 %v610
    %655 = vmatprep.subr.bf16.mxu0 0
    %656 = vmatpush1.bf16.msra.mxu0 %v609
    %657 = vmatprep.subr.bf16.mxu0 0
    %658 = vmatpush2.bf16.msra.mxu0 %v624
    %659 = vmatprep.subr.bf16.mxu0 0
    %660 = vmatpush2.bf16.msra.mxu0 %v623
    %661 = vmatprep.subr.bf16.mxu0 0
    %662 = vmatpush2.bf16.msra.mxu0 %v622
    %663 = vmatprep.subr.bf16.mxu0 0
    %664 = vmatpush2.bf16.msra.mxu0 %v621
    %665 = vmatprep.subr.bf16.mxu0 0
    %666 = vmatpush2.bf16.msra.mxu0 %v620
    %667 = vmatprep.subr.bf16.mxu0 0
    %668 = vmatpush2.bf16.msra.mxu0 %v619
    %669 = vmatprep.subr.bf16.mxu0 0
    %670 = vmatpush2.bf16.msra.mxu0 %v618
    %671 = vmatprep.subr.bf16.mxu0 0
    %672 = vmatpush2.bf16.msra.mxu0 %v617
    %673 = vmatprep.mubr.bf16.mxu0 %v505
    %674 = vmatmul.mubr.bf16.gmra.mxu0 %v504
    %v675 = vpop.f32.mrf.mxu0
    %v676 = vadd.f32 %v543, %v675
    %v677 = vpop.f32.mrf.mxu0
    %v678 = vpop.f32.mrf.mxu0
    %v679 = vpop.f32.mrf.mxu0
    %680 = vdwg.mxu0
    %v681 = vmul.f32 %v676, %v676
    %vm682 = vcmask 1041408
    %v683 = vsel %vm682, %v681, 0.0
    %684 = vadd.xlane.f32.xlu0 %v683
    %v685 = vpop.xlane.xlu0 %684
    %v686 = vadd.f32 %v685, 1e-12
    %v687 = vrsqrt.pop %v686
    %v688 = vmul.f32 %v676, %v687
    %689 = vst [vmem:[#allocation8] sm:$0x3] %v688
    // Predicated region
    $region38: #{tpu_custom_call.1} parent=1 // pred_check
      _
    $region39: #{tpu_custom_call.1} parent=1 // pred_check_branch
      %691 = sbr.rel (0) target = $region41
    $region40: #{tpu_custom_call.1} parent=1 // pred_region
      %s693 = ssub.s32 32, 32
      %694 = vsyncadd [#allocation4], %s693
      %s696 = sshll.u32 [#allocation8], 4
      %s697 = int_to_ptr.vmem [resolvable:$true] %s696
      %699 = dma.vmem_to_hbm [thread:$0]  %s697, 32, %s6, [#allocation4]
    $region41: #{tpu_custom_call.1} parent=1 // pred_fallthru
      _
    // Predicated region
    $region42: #{tpu_custom_call.1} parent=1 // pred_check
      _
    $region43: #{tpu_custom_call.1} parent=1 // pred_check_branch
      %701 = sbr.rel (0) target = $region45
    $region44: #{tpu_custom_call.1} parent=1 // pred_region
      %702 = dma.done [#allocation4], 32
    $region45: #{tpu_custom_call.1} parent=1 // pred_fallthru
      _
    %703 = vsyncpa [#allocation3], 1
    %704 = vsyncpa [#allocation6], 1
    %705 = vsyncpa [#allocation4], 1

</llo_original>
